<compile_context>
chip_gen: v5e
topology: v5e:2x2
jax: 0.10.0
libtpu: 0.0.40
codegen_flags: <defaults>
</compile_context>

<pallas_src>
import math
import functools

import jax
import jax.numpy as jnp
from jax.experimental import pallas as pl
from jax.experimental.pallas import tpu as pltpu


# --------------------------------------------------------------------------
# VMEM budgeting helpers
# --------------------------------------------------------------------------
def _vmem_capacity_bytes():
    try:
        info = pltpu.get_tpu_info()
        cap = getattr(info, "vmem_capacity_bytes", None)
        if cap:
            return int(cap)
    except Exception:
        pass
    return 64 << 20  # conservative default (v7x per-TensorCore VMEM)


def _vmem_limit(estimate_bytes):
    cap = _vmem_capacity_bytes()
    want = int(estimate_bytes * 1.5) + (8 << 20)     # headroom for compiler scratch
    return int(min(max(32 << 20, want), int(cap * 0.8)))


# --------------------------------------------------------------------------
# Kernel 1: tiled dense linear  y = x @ Wt + b   (fused QKV proj & out proj)
#   grid = (row tiles, col tiles, K tiles); f32 accumulator, init/finalize
#   via pl.when.  When the whole weight fits the budget we use full-N/full-K
#   blocks so the weight is DMA'd from HBM exactly once.
# --------------------------------------------------------------------------
def _linear_kernel(x_ref, wt_ref, b_ref, o_ref, acc_ref):
    @pl.when(pl.program_id(2) == 0)
    def _():
        acc_ref[...] = jnp.zeros_like(acc_ref)

    acc_ref[...] += jnp.dot(x_ref[...], wt_ref[...],
                            preferred_element_type=jnp.float32)

    @pl.when(pl.program_id(2) == pl.num_programs(2) - 1)
    def _():
        o_ref[...] = (acc_ref[...] + b_ref[...].astype(jnp.float32)
                      ).astype(o_ref.dtype)


def _linear_vmem_estimate(tm, tn, tk, isz):
    return (2 * tm * tk + 2 * tk * tn + 2 * tn + 2 * tm * tn) * isz + tm * tn * 4


def _choose_linear_tiles(n, in_dim, out_dim, isz, budget=24 << 20):
    tm = n if n <= 512 else 512
    # Weight-resident path: full-N / full-K blocks -> weight block index is
    # constant across the row-tile axis, so the (in,out) weight is read from
    # HBM exactly once (and activations exactly once).
    if _linear_vmem_estimate(tm, out_dim, in_dim, isz) <= budget:
        return tm, out_dim, in_dim
    tn = out_dim if out_dim <= 512 else 512
    tk = in_dim
    if in_dim > 1024:
        for cand in (1024, 512, 256, 128):   # exact divisors only (K padding is unsafe)
            if in_dim % cand == 0:
                tk = cand
                break
    while _linear_vmem_estimate(tm, tn, tk, isz) > budget and tm > 64:
        tm //= 2
    return tm, tn, tk


def linear(x, wt, b):
    """x: (N, in), wt: (in, out), b: (1, out) -> (N, out)."""
    n, in_dim = x.shape
    out_dim = wt.shape[1]
    isz = x.dtype.itemsize
    tm, tn, tk = _choose_linear_tiles(n, in_dim, out_dim, isz)
    grid = (pl.cdiv(n, tm), pl.cdiv(out_dim, tn), pl.cdiv(in_dim, tk))
    est = _linear_vmem_estimate(tm, tn, tk, isz)
    return pl.pallas_call(
        _linear_kernel,
        out_shape=jax.ShapeDtypeStruct((n, out_dim), x.dtype),
        grid_spec=pltpu.PrefetchScalarGridSpec(
            num_scalar_prefetch=0,
            grid=grid,
            in_specs=[
                pl.BlockSpec((tm, tk), lambda i, j, k: (i, k)),
                pl.BlockSpec((tk, tn), lambda i, j, k: (k, j)),
                pl.BlockSpec((1, tn), lambda i, j, k: (0, j)),
            ],
            out_specs=pl.BlockSpec((tm, tn), lambda i, j, k: (i, j)),
            scratch_shapes=[pltpu.VMEM((tm, tn), jnp.float32)],
        ),
        compiler_params=pltpu.CompilerParams(
            dimension_semantics=("parallel", "parallel", "arbitrary"),
            vmem_limit_bytes=_vmem_limit(est),
        ),
    )(x, wt, b)


# --------------------------------------------------------------------------
# Kernel 2: attention core.  One step = (batch tile, head group).
#   Input  qkv : (T, B, 3E) lane-dense, packed per head as [q_h, k_h, v_h]
#                (q pre-scaled by head_dim**-0.5 at param-prep time).
#   Input  bias: (B, H, T, S) graph attention bias (upcast to f32 in-kernel).
#   Output o   : (T, B, E)   lane-dense per-head-concat attention output.
#   Output p   : (B, T, S)   f32 head-averaged weights (optional; accumulated
#                            across head groups).
# --------------------------------------------------------------------------
def _mha_core_kernel(qkv_ref, bias_ref, o_ref, *rest,
                     heads_per_group, head_dim, num_heads,
                     approx_recip, bf16_matmul):
    p_ref = rest[0] if rest else None
    gh, d = heads_per_group, head_dim
    t = qkv_ref.shape[0]
    bt = qkv_ref.shape[1]
    s_len = bias_ref.shape[-1]
    n = bt * gh

    # Single lane-dense DMA of q,k,v for this (batch tile, head group); the
    # per-head split is a VMEM-only relayout (never touches HBM).
    blk = qkv_ref[...]                                   # (t, bt, gh*3*d)
    qkv = blk.reshape(t, bt, gh, 3, d)
    q = qkv[:, :, :, 0, :].reshape(t, n, d)              # already * d**-0.5
    k = qkv[:, :, :, 1, :].reshape(t, n, d)
    v = qkv[:, :, :, 2, :].reshape(t, n, d)
    bias = bias_ref[...].astype(jnp.float32).reshape(n, t, s_len)

    if bf16_matmul:                                      # opt-in MXU speedup
        q = q.astype(jnp.bfloat16)
        k = k.astype(jnp.bfloat16)

    # Batched contraction over d (no k.T materialized); f32 accumulation.
    scores = jnp.einsum("tnd,snd->nts", q, k,
                        preferred_element_type=jnp.float32) + bias

    # float32 softmax (matches F.softmax(..., dtype=torch.float32)).
    m = jnp.max(scores, axis=-1, keepdims=True)
    e = jnp.exp(scores - m)
    denom = jnp.sum(e, axis=-1, keepdims=True)
    if approx_recip:
        inv = pl.reciprocal(denom, approx=True)          # EUP, not bit-faithful
    else:
        inv = 1.0 / denom                                # reciprocal-then-multiply
    p = e * inv                                          # (n, t, s) f32

    # Probs cast back to activation dtype before P@V (as the module does).
    pv = p.astype(jnp.bfloat16 if bf16_matmul else v.dtype)
    vv = v.astype(jnp.bfloat16) if bf16_matmul else v
    attn = jnp.einsum("nts,snd->tnd", pv, vv,
                      preferred_element_type=jnp.float32)  # (t, n, d)

    # One lane-dense store of the full block (no per-head partial stores).
    o_ref[...] = attn.reshape(o_ref.shape).astype(o_ref.dtype)

    if p_ref is not None:
        # Fused head-average, accumulated across head-group grid steps
        # (p block is VMEM-resident across the "arbitrary" head axis).
        contrib = jnp.sum(p.reshape(bt, gh, t, s_len), axis=1) \
            * jnp.float32(1.0 / num_heads)

        @pl.when(pl.program_id(1) == 0)
        def _():
            p_ref[...] = jnp.zeros(p_ref.shape, p_ref.dtype)

        p_ref[...] += contrib


def _attn_vmem_estimate(bt, gh, T, D, act_isz, bias_isz, need_weights):
    n = bt * gh
    io = (2 * T * bt * gh * 3 * D * act_isz        # qkv block (double-buffered)
          + 2 * bt * gh * T * T * bias_isz         # bias block
          + 2 * T * bt * gh * D * act_isz)         # output block
    if need_weights:
        io += 2 * bt * T * T * 4                   # averaged-weights block (f32)
    work = 3 * n * T * T * 4 + 4 * T * n * D * 4   # scores/exp/probs + q,k,v,attn f32
    return io + work


def _choose_attn_tiles(B, H, T, D, act_isz, bias_isz, need_weights,
                       budget=24 << 20):
    # batch tile: full B when small, else a sublane-friendly multiple of 8
    bt = B if B <= 8 else 8
    # head group: must keep the last-dim blocks lane-dense (gh*D % 128 == 0)
    # or cover all heads (full-dim block).
    cands = [g for g in range(H, 0, -1)
             if H % g == 0 and (g == H or (g * D) % 128 == 0)]
    for gh in cands:   # largest head group that fits the VMEM budget
        if _attn_vmem_estimate(bt, gh, T, D, act_isz, bias_isz,
                               need_weights) <= budget:
            return bt, gh
    # TODO(synk): for very long T even the smallest head group exceeds the
    # budget -> needs flash-style KV tiling (online softmax); not implemented.
    return bt, cands[-1]


# --------------------------------------------------------------------------
# One-time parameter packing: per-head [q_h, k_h, v_h] column blocks with the
# 1/sqrt(D) scaling folded into the q part.
# --------------------------------------------------------------------------
def prepare_params(params, num_heads):
    e = params["q_w"].shape[0]
    d = e // num_heads
    scaling = d ** (-0.5)

    def per_head_t(w):                          # (E_out, E_in) -> (E_in, H, D)
        return w.T.reshape(e, num_heads, d)

    wt_q = per_head_t(params["q_w"]) * scaling
    wt_k = per_head_t(params["k_w"])
    wt_v = per_head_t(params["v_w"])
    qkv_wt = jnp.stack([wt_q, wt_k, wt_v], axis=2).reshape(e, 3 * e)

    b_q = params["q_b"].reshape(num_heads, d) * scaling
    b_k = params["k_b"].reshape(num_heads, d)
    b_v = params["v_b"].reshape(num_heads, d)
    qkv_b = jnp.stack([b_q, b_k, b_v], axis=1).reshape(1, 3 * e)

    return {
        "qkv_wt": qkv_wt,
        "qkv_b": qkv_b,
        "out_wt": params["out_w"].T,
        "out_b": params["out_b"].reshape(1, e),
    }


def multihead_attention_forward(query, attn_bias, packed, num_heads, *,
                                need_weights=True,
                                approx_softmax_recip=False,
                                bf16_attention_matmuls=False,
                                bias_transport_dtype=None):
    """Mirrors MultiheadAttention.forward(query, query, query, attn_bias),
    eval mode.  Returns (attn, head-averaged weights or None)."""
    T, B, E = query.shape
    H = num_heads
    D = E // H
    assert D * H == E

    # ---- fused Q/K/V projection; rows stay in (t, b) order throughout ------
    x2 = query.reshape(T * B, E)
    qkv = linear(x2, packed["qkv_wt"], packed["qkv_b"])         # (T*B, 3E)
    qkv3 = qkv.reshape(T, B, 3 * E)                             # lane-dense view

    bias = attn_bias.reshape(B, H, T, T)
    if bias_transport_dtype is not None:
        bias = bias.astype(bias_transport_dtype)   # e.g. bf16 HBM transport (v5e)

    bt, gh = _choose_attn_tiles(B, H, T, D, query.dtype.itemsize,
                                bias.dtype.itemsize, need_weights)
    n_groups = H // gh
    grid = (pl.cdiv(B, bt), n_groups)
    est = _attn_vmem_estimate(bt, gh, T, D, query.dtype.itemsize,
                              bias.dtype.itemsize, need_weights)

    kernel = functools.partial(
        _mha_core_kernel, heads_per_group=gh, head_dim=D, num_heads=H,
        approx_recip=approx_softmax_recip, bf16_matmul=bf16_attention_matmuls)

    in_specs = [
        pl.BlockSpec((T, bt, gh * 3 * D), lambda b, g: (0, b, g)),
        pl.BlockSpec((bt, gh, T, T), lambda b, g: (b, g, 0, 0)),
    ]
    if need_weights:
        out_shape = (jax.ShapeDtypeStruct((T, B, E), query.dtype),
                     jax.ShapeDtypeStruct((B, T, T), jnp.float32))
        out_specs = (pl.BlockSpec((T, bt, gh * D), lambda b, g: (0, b, g)),
                     pl.BlockSpec((bt, T, T), lambda b, g: (b, 0, 0)))
        semantics = ("parallel", "arbitrary")   # weights accumulate across head groups
    else:
        out_shape = jax.ShapeDtypeStruct((T, B, E), query.dtype)
        out_specs = pl.BlockSpec((T, bt, gh * D), lambda b, g: (0, b, g))
        semantics = ("parallel", "parallel")

    res = pl.pallas_call(
        kernel,
        grid=grid,
        out_shape=out_shape,
        in_specs=in_specs,
        out_specs=out_specs,
        compiler_params=pltpu.CompilerParams(
            dimension_semantics=semantics,
            vmem_limit_bytes=_vmem_limit(est),
        ),
    )(qkv3, bias)

    if need_weights:
        attn_tbe, attn_weights = res
    else:
        attn_tbe, attn_weights = res, None

    # ---- output projection; rows already in (t, b) order: no transposes ----
    out = linear(attn_tbe.reshape(T * B, E), packed["out_wt"], packed["out_b"])
    return out.reshape(T, B, E), attn_weights
    # TODO(synk): key_padding_mask / attn_mask / dropout / quant_noise branches
    # are identity or None in eval-mode self-attention and are not implemented.


# --------------------------------------------------------------------------
# Deterministic parameter init (xavier_uniform, matching reset_parameters)
# --------------------------------------------------------------------------
def init_params(key, embed_dim):
    def xavier(k, shape, gain):
        fan_out, fan_in = shape
        bound = gain * math.sqrt(6.0 / (fan_in + fan_out))
        return jax.random.uniform(k, shape, jnp.float32, -bound, bound)

    ks = jax.random.split(key, 8)
    g = 1.0 / math.sqrt(2.0)
    inv = 1.0 / math.sqrt(embed_dim)
    return {
        "q_w": xavier(ks[0], (embed_dim, embed_dim), g),
        "k_w": xavier(ks[1], (embed_dim, embed_dim), g),
        "v_w": xavier(ks[2], (embed_dim, embed_dim), g),
        "out_w": xavier(ks[3], (embed_dim, embed_dim), 1.0),
        "q_b": jax.random.uniform(ks[4], (embed_dim,), jnp.float32, -inv, inv),
        "k_b": jax.random.uniform(ks[5], (embed_dim,), jnp.float32, -inv, inv),
        "v_b": jax.random.uniform(ks[6], (embed_dim,), jnp.float32, -inv, inv),
        "out_b": jnp.zeros((embed_dim,), jnp.float32),
    }


# --------------------------------------------------------------------------
# Pure-JAX reference for verification (uses the original, unpacked params)
# --------------------------------------------------------------------------
def reference_forward(query, attn_bias, params, num_heads):
    T, B, E = query.shape
    H, D = num_heads, E // num_heads
    scaling = D ** (-0.5)
    x2 = query.reshape(T * B, E)
    q = x2 @ params["q_w"].T + params["q_b"]
    k = x2 @ params["k_w"].T + params["k_b"]
    v = x2 @ params["v_w"].T + params["v_b"]
    q = q * scaling
    q = q.reshape(T, B * H, D).transpose(1, 0, 2)
    k = k.reshape(T, B * H, D).transpose(1, 0, 2)
    v = v.reshape(T, B * H, D).transpose(1, 0, 2)
    s = jnp.einsum("btd,bsd->bts", q, k) + attn_bias.reshape(B * H, T, T)
    p = jax.nn.softmax(s.astype(jnp.float32), axis=-1)
    a = jnp.einsum("bts,bsd->btd", p, v)
    a = a.transpose(1, 0, 2).reshape(T * B, E)
    out = (a @ params["out_w"].T + params["out_b"]).reshape(T, B, E)
    w = p.reshape(B, H, T, T).mean(axis=1)
    return out, w


if __name__ == "__main__":
    # small shapes: seq(tgt_len)=8, batch=2, embed_dim=32, heads=4 (head_dim=8)
    T, B, E, H = 8, 2, 32, 4

    key = jax.random.PRNGKey(0)
    k_param, k_query, k_bias = jax.random.split(key, 3)

    params = init_params(k_param, E)
    packed = prepare_params(params, H)                                # one-time prep
    query = jax.random.normal(k_query, (T, B, E), jnp.float32)        # (Time, Batch, Channel)
    attn_bias = jax.random.normal(k_bias, (B, H, T, T), jnp.float32)  # graph attention bias

    out, attn_weights = multihead_attention_forward(
        query, attn_bias, packed, H, need_weights=True)
    out = jax.block_until_ready(out)
    attn_weights = jax.block_until_ready(attn_weights)

    ref_out, ref_w = reference_forward(query, attn_bias, params, H)
    assert out.shape == (T, B, E) and attn_weights.shape == (B, T, T)
    assert jnp.allclose(out, ref_out, rtol=1e-4, atol=1e-4)
    assert jnp.allclose(attn_weights, ref_w, rtol=1e-4, atol=1e-4)

    # need_weights=False fast path (drops the (B,T,T) f32 writeback).
    out_nw, w_none = multihead_attention_forward(
        query, attn_bias, packed, H, need_weights=False)
    out_nw = jax.block_until_ready(out_nw)
    assert w_none is None
    assert jnp.allclose(out_nw, ref_out, rtol=1e-4, atol=1e-4)

    print("KERNEL_OK")
</pallas_src>

<mosaic_0001>
module attributes {stable_mosaic.version = 11 : i64} {
  func.func @_linear_kernel(%arg0: i32, %arg1: i32, %arg2: i32, %arg3: memref<16x32xf32, #tpu.memory_space<vmem>>, %arg4: memref<32x96xf32, #tpu.memory_space<vmem>>, %arg5: memref<1x96xf32, #tpu.memory_space<vmem>>, %arg6: memref<16x96xf32, #tpu.memory_space<vmem>>, %arg7: memref<16x96xf32, #tpu.memory_space<vmem>>) attributes {dimension_semantics = [#tpu.dimension_semantics<parallel>, #tpu.dimension_semantics<parallel>, #tpu.dimension_semantics<arbitrary>], iteration_bounds = array<i64: 1, 1, 1>, scalar_prefetch = 0 : i64, scratch_operands = 1 : i64, tpu.core_type = #tpu.core_type<tc>, window_params = [{transform_indices = @transform_0, window_bounds = array<i64: 16, 32>}, {transform_indices = @transform_1, window_bounds = array<i64: 32, 96>}, {transform_indices = @transform_2, window_bounds = array<i64: 1, 96>}, {transform_indices = @transform_3, window_bounds = array<i64: 16, 96>}]} {
    %c0_i32 = arith.constant 0 : i32
    %0 = arith.cmpi eq, %arg2, %c0_i32 : i32
    %1 = arith.extui %0 : i1 to i32
    %c0_i32_0 = arith.constant 0 : i32
    %2 = arith.cmpi ne, %1, %c0_i32_0 : i32
    scf.if %2 {
      %cst_10 = arith.constant 0.000000e+00 : f32
      %12 = vector.broadcast %cst_10 : f32 to vector<16x96xf32>
      %c0_11 = arith.constant 0 : index
      %c0_12 = arith.constant 0 : index
      %13 = vector.load %arg7[%c0_11, %c0_12] : memref<16x96xf32, #tpu.memory_space<vmem>>, vector<16x96xf32>
      tpu.vector_store %arg7[%c0_11, %c0_12], %12 {strides = array<i32>} : memref<16x96xf32, #tpu.memory_space<vmem>>, vector<16x96xf32>,
    } else {
    }
    %c0 = arith.constant 0 : index
    %c0_1 = arith.constant 0 : index
    %3 = vector.load %arg7[%c0, %c0_1] : memref<16x96xf32, #tpu.memory_space<vmem>>, vector<16x96xf32>
    %c0_2 = arith.constant 0 : index
    %c0_3 = arith.constant 0 : index
    %4 = vector.load %arg3[%c0_2, %c0_3] : memref<16x32xf32, #tpu.memory_space<vmem>>, vector<16x32xf32>
    %c0_4 = arith.constant 0 : index
    %c0_5 = arith.constant 0 : index
    %5 = vector.load %arg4[%c0_4, %c0_5] : memref<32x96xf32, #tpu.memory_space<vmem>>, vector<32x96xf32>
    %cst = arith.constant dense<0.000000e+00> : vector<16x96xf32>
    %6 = tpu.matmul %4, %5, %cst {dimension_numbers = #tpu.dot_dimension_numbers<[1], [0], [0], [1], [0, 0, 1, 1], [], []>} : vector<16x32xf32>, vector<32x96xf32>, vector<16x96xf32> -> vector<16x96xf32>
    %7 = arith.addf %3, %6 : vector<16x96xf32>
    %c0_6 = arith.constant 0 : index
    %c0_7 = arith.constant 0 : index
    %8 = vector.load %arg7[%c0_6, %c0_7] : memref<16x96xf32, #tpu.memory_space<vmem>>, vector<16x96xf32>
    tpu.vector_store %arg7[%c0_6, %c0_7], %7 {strides = array<i32>} : memref<16x96xf32, #tpu.memory_space<vmem>>, vector<16x96xf32>,
    %c0_i32_8 = arith.constant 0 : i32
    %9 = arith.cmpi eq, %arg2, %c0_i32_8 : i32
    %10 = arith.extui %9 : i1 to i32
    %c0_i32_9 = arith.constant 0 : i32
    %11 = arith.cmpi ne, %10, %c0_i32_9 : i32
    scf.if %11 {
      %c0_10 = arith.constant 0 : index
      %c0_11 = arith.constant 0 : index
      %12 = vector.load %arg7[%c0_10, %c0_11] : memref<16x96xf32, #tpu.memory_space<vmem>>, vector<16x96xf32>
      %c0_12 = arith.constant 0 : index
      %c0_13 = arith.constant 0 : index
      %13 = vector.load %arg5[%c0_12, %c0_13] : memref<1x96xf32, #tpu.memory_space<vmem>>, vector<1x96xf32>
      %14 = vector.broadcast %13 : vector<1x96xf32> to vector<16x96xf32>
      %15 = arith.addf %12, %14 : vector<16x96xf32>
      %c0_14 = arith.constant 0 : index
      %c0_15 = arith.constant 0 : index
      %16 = vector.load %arg6[%c0_14, %c0_15] : memref<16x96xf32, #tpu.memory_space<vmem>>, vector<16x96xf32>
      tpu.vector_store %arg6[%c0_14, %c0_15], %15 {strides = array<i32>} : memref<16x96xf32, #tpu.memory_space<vmem>>, vector<16x96xf32>,
    } else {
    }
    return
  }
  func.func @transform_0(%arg0: i32, %arg1: i32, %arg2: i32) -> (i32, i32) {
    %c0_i32 = arith.constant 0 : i32
    return %arg0, %arg2 : i32, i32
  }
  func.func @transform_1(%arg0: i32, %arg1: i32, %arg2: i32) -> (i32, i32) {
    %c0_i32 = arith.constant 0 : i32
    return %arg2, %arg1 : i32, i32
  }
  func.func @transform_2(%arg0: i32, %arg1: i32, %arg2: i32) -> (i32, i32) {
    %c0_i32 = arith.constant 0 : i32
    %c0_i32_0 = arith.constant 0 : i32
    return %c0_i32, %arg1 : i32, i32
  }
  func.func @transform_3(%arg0: i32, %arg1: i32, %arg2: i32) -> (i32, i32) {
    %c0_i32 = arith.constant 0 : i32
    return %arg0, %arg1 : i32, i32
  }
}

</mosaic_0001>

<llo_original>
// kernel: tpu_custom_call.1
$region0: #{tpu_custom_call.1}
  #allocation0 [shape = 'u32[]', space=smem, size = 0x4, offset = 0x4, fixed_abs, tag = 'smem constant byte address 0x4 - core index']
  #allocation1 [shape = 'u32[72,128]{1,0:T(1,128)}', space=vmem, size = 0x9000, scoped, tag = 'internal scratch']
  #allocation2 [shape = 'f32[16,96]{1,0:T(8,128)}', space=vmem, size = 0x2000, scoped, tag = 'scratch operand']
  %s0 = inlined_call_operand.hbm [shape: f32[16,32], index: 0, kind: input, shape index: {}]
  %s1 = inlined_call_operand.hbm [shape: f32[32,96], index: 1, kind: input, shape index: {}]
  %s2 = inlined_call_operand.vmem [shape: f32[1,96], index: 2, kind: input, shape index: {}]
  %s3 = inlined_call_operand.hbm [shape: f32[16,96], index: 3, kind: output, shape index: {}]
  %s4 = sld [smem:[#allocation0]]
  $region38: #{tpu_custom_call.1} parent=0
    _
  %s6 = ssub.s32 1, %s4
  %s7 = scalar_select 0, %s6, %s4
  $region1: #{tpu_custom_call.1} parent=0
    #allocation3 [shape = 'u8[8192]{0}', space=vmem, size = 0x2000, scoped, tag = 'input window, operand 0, single buffered']
    #allocation4 [shape = 's32[1]{0}', space=sflag, size = 0x4, scoped, tag = 'scoped memory for tpu_custom_call.1']
    #allocation5 [shape = 's32[1]{0}', space=sflag, size = 0x4, scoped, tag = 'scoped memory for tpu_custom_call.1']
    #allocation6 [shape = 'u8[16384]{0}', space=vmem, size = 0x4000, scoped, tag = 'input window, operand 1, single buffered']
    #allocation7 [shape = 's32[1]{0}', space=sflag, size = 0x4, scoped, tag = 'scoped memory for tpu_custom_call.1']
    #allocation8 [shape = 'u8[8192]{0}', space=vmem, size = 0x2000, scoped, tag = 'output window, operand 0, single buffered']
    %8 = vsyncpa [#allocation4], 0
    %9 = vsyncpa [#allocation7], 0
    %10 = vsyncpa [#allocation5], 0
    // Predicated region
    $region2: #{tpu_custom_call.1} parent=1 // pred_check
      _
    $region3: #{tpu_custom_call.1} parent=1 // pred_check_branch
      %12 = sbr.rel (0) target = $region5
    $region4: #{tpu_custom_call.1} parent=1 // pred_region
      %14 = vsyncadd [#allocation4], 0
      %s15 = sshll.u32 %s0, 4
      %s16 = int_to_ptr.hbm [resolvable:$true] %s15
      %s17 = sshll.u32 [#allocation3], 4
      %s18 = int_to_ptr.vmem [resolvable:$true] %s17
      %23 = dma.hbm_to_vmem [thread:$0]  %s16, 256, %s18, [#allocation4], 128, 128, 8
    $region5: #{tpu_custom_call.1} parent=1 // pred_fallthru
      _
    // Predicated region
    $region6: #{tpu_custom_call.1} parent=1 // pred_check
      _
    $region7: #{tpu_custom_call.1} parent=1 // pred_check_branch
      %25 = sbr.rel (0) target = $region9
    $region8: #{tpu_custom_call.1} parent=1 // pred_region
      %27 = vsyncadd [#allocation7], 0
      %s28 = sshll.u32 %s1, 4
      %s29 = int_to_ptr.hbm [resolvable:$true] %s28
      %s30 = sshll.u32 [#allocation6], 4
      %s31 = int_to_ptr.vmem [resolvable:$true] %s30
      %36 = dma.hbm_to_vmem [thread:$0]  %s29, 512, %s31, [#allocation7], 128, 128, 8
    $region9: #{tpu_custom_call.1} parent=1 // pred_fallthru
      _
    // Predicated region
    $region10: #{tpu_custom_call.1} parent=1 // pred_check
      _
    $region11: #{tpu_custom_call.1} parent=1 // pred_check_branch
      %38 = sbr.rel (0) target = $region13
    $region12: #{tpu_custom_call.1} parent=1 // pred_region
      _
    $region13: #{tpu_custom_call.1} parent=1 // pred_fallthru
      _
    // Predicated region
    $region14: #{tpu_custom_call.1} parent=1 // pred_check
      _
    $region15: #{tpu_custom_call.1} parent=1 // pred_check_branch
      %40 = sbr.rel (0) target = $region17
    $region16: #{tpu_custom_call.1} parent=1 // pred_region
      %42 = dma.done [#allocation4], 256
    $region17: #{tpu_custom_call.1} parent=1 // pred_fallthru
      _
    // Predicated region
    $region18: #{tpu_custom_call.1} parent=1 // pred_check
      _
    $region19: #{tpu_custom_call.1} parent=1 // pred_check_branch
      %44 = sbr.rel (0) target = $region21
    $region20: #{tpu_custom_call.1} parent=1 // pred_region
      %46 = dma.done [#allocation7], 512
    $region21: #{tpu_custom_call.1} parent=1 // pred_fallthru
      _
    %p47 = scmp.eq.s32.totalorder 0, 0
    // Predicated region
    $region22: #{tpu_custom_call.1} parent=1 // pred_check
      %p48 = pneg %p47
    $region23: #{tpu_custom_call.1} parent=1 // pred_check_branch
      %50 = sbr.rel (%p48) target = $region25
    $region24: #{tpu_custom_call.1} parent=1 // pred_region
      %vm51 = vcmask 785408
      %52 = vst.msk [vmem:[#allocation2] sm:$0xff] %vm51, 0.0
      %53 = vst.msk [vmem:[#allocation2 + $0x8] sm:$0xff] %vm51, 0.0
    $region25: #{tpu_custom_call.1} parent=1 // pred_fallthru
      _
    %v54 = vld [vmem:[#allocation2] sm:$0xff]
    %v55 = vld [vmem:[#allocation2 + $0x8] sm:$0xff]
    %v56 = vld [vmem:[#allocation3] sm:$0xff]
    %v57 = vld [vmem:[#allocation3 + $0x8] sm:$0xff]
    %v58 = vld [vmem:[#allocation6] sm:$0xff]
    %v59 = vld [vmem:[#allocation6 + $0x8] sm:$0xff]
    %v60 = vld [vmem:[#allocation6 + $0x10] sm:$0xff]
    %v61 = vld [vmem:[#allocation6 + $0x18] sm:$0xff]
    %vm62 = vcmask 261120
    %v64 = vsel %vm62, %v56, 0
    %v67 = vsel %vm62, %v57, 0
    %69 = vmatpush.msra.mxu0 0.0
    %70 = vmatpush.msra.mxu0 0.0
    %71 = vmatpush.msra.mxu0 0.0
    %72 = vmatpush.msra.mxu0 0.0
    %73 = vmatpush.msra.mxu0 0.0
    %74 = vmatpush.msra.mxu0 0.0
    %75 = vmatpush.msra.mxu0 0.0
    %76 = vmatpush.msra.mxu0 0.0
    %77 = vmatpush.msra.mxu0 0.0
    %78 = vmatpush.msra.mxu0 0.0
    %79 = vmatpush.msra.mxu0 0.0
    %80 = vmatpush.msra.mxu0 0.0
    %81 = vmatpush.msra.mxu0 %v61
    %82 = vmatpush.msra.mxu0 %v60
    %83 = vmatpush.msra.mxu0 %v59
    %84 = vmatpush.msra.mxu0 %v58
    %85 = vmatmul.f32.gmra.mxu0 %v64
    %v86 = vpop.f32.mrf.mxu0
    %v87 = vadd.f32 0.0, %v86
    %88 = vmatmul.f32.gmra.mxu0 %v67
    %v89 = vpop.f32.mrf.mxu0
    %v90 = vadd.f32 0.0, %v89
    %91 = vdwg.mxu0
    %v92 = vadd.f32 %v54, %v87
    %v93 = vadd.f32 %v55, %v90
    %vm94 = vcmask 785408
    %95 = vst.msk [vmem:[#allocation2] sm:$0xff] %vm94, %v92
    %96 = vst.msk [vmem:[#allocation2 + $0x8] sm:$0xff] %vm94, %v93
    // Predicated region
    $region26: #{tpu_custom_call.1} parent=1 // pred_check
      %p97 = pneg %p47
    $region27: #{tpu_custom_call.1} parent=1 // pred_check_branch
      %99 = sbr.rel (%p97) target = $region29
    $region28: #{tpu_custom_call.1} parent=1 // pred_region
      %v100 = vld [vmem:[#allocation2] sm:$0xff]
      %v101 = vld [vmem:[#allocation2 + $0x8] sm:$0xff]
      %v102 = vld [vmem:[%s2] sm:$0x1]
      %v104 = vperm.slane %v102, 0
      %v106 = vadd.f32 %v100, %v104
      %v107 = vadd.f32 %v101, %v104
      %108 = vst.msk [vmem:[#allocation8] sm:$0xff] %vm94, %v106
      %109 = vst.msk [vmem:[#allocation8 + $0x8] sm:$0xff] %vm94, %v107
    $region29: #{tpu_custom_call.1} parent=1 // pred_fallthru
      _
    // Predicated region
    $region30: #{tpu_custom_call.1} parent=1 // pred_check
      _
    $region31: #{tpu_custom_call.1} parent=1 // pred_check_branch
      %111 = sbr.rel (0) target = $region33
    $region32: #{tpu_custom_call.1} parent=1 // pred_region
      %113 = vsyncadd [#allocation5], 0
      %s114 = sshll.u32 [#allocation8], 4
      %s115 = int_to_ptr.vmem [resolvable:$true] %s114
      %s116 = sshll.u32 %s3, 4
      %s117 = int_to_ptr.hbm [resolvable:$true] %s116
      %122 = dma.vmem_to_hbm [thread:$0]  %s115, 256, %s117, [#allocation5], 128, 128, 8
    $region33: #{tpu_custom_call.1} parent=1 // pred_fallthru
      _
    // Predicated region
    $region34: #{tpu_custom_call.1} parent=1 // pred_check
      _
    $region35: #{tpu_custom_call.1} parent=1 // pred_check_branch
      %124 = sbr.rel (0) target = $region37
    $region36: #{tpu_custom_call.1} parent=1 // pred_region
      %126 = dma.done [#allocation5], 256
    $region37: #{tpu_custom_call.1} parent=1 // pred_fallthru
      _
    %127 = vsyncpa [#allocation4], 1
    %128 = vsyncpa [#allocation7], 1
    %129 = vsyncpa [#allocation5], 1

</llo_original>
